<compile_context>
chip_gen: v6e
topology: v6e:2x2x1
jax: 0.10.0
libtpu: 0.0.40
codegen_flags: <defaults>
</compile_context>

<pallas_src>
import jax
import jax.numpy as jnp
from jax.experimental import pallas as pl
from jax.experimental.pallas import tpu as pltpu


def _round_up(x, m):
    return ((x + m - 1) // m) * m


def pooler_end_logits_kernel(x1_ref, x2_ref, w0a_ref, w0b_ref, b0_ref,
                             g_ref, beta_ref, w1_ref, b1_ref, o_ref):
    # x1_ref: (TM, H1) tile, x2_ref: (TM, H2) tile; H1 + H2 == hidden_size.
    x1 = x1_ref[...].astype(w0a_ref.dtype)
    x2 = x2_ref[...].astype(w0b_ref.dtype)

    # dense_0 on the (virtually) concatenated input: x1 @ W0a + x2 @ W0b + b0.
    # MXU accumulates in f32; matmul operands stay in their native dtype.
    h = (jnp.dot(x1, w0a_ref[...], preferred_element_type=jnp.float32)
         + jnp.dot(x2, w0b_ref[...], preferred_element_type=jnp.float32)
         + b0_ref[...].astype(jnp.float32))

    # tanh activation (f32 on the VPU/EUP).
    h = jnp.tanh(h)

    # LayerNorm over the last dim (eps = 1e-5, matching nn.LayerNorm default),
    # all in f32.
    mean = jnp.mean(h, axis=-1, keepdims=True)
    var = jnp.mean((h - mean) ** 2, axis=-1, keepdims=True)
    h = (h - mean) * jax.lax.rsqrt(var + 1e-5)
    h = h * g_ref[...].astype(jnp.float32) + beta_ref[...].astype(jnp.float32)

    # dense_1: h @ W1 + b1 (output last dim is lane-padded to a multiple of 128).
    out = (jnp.dot(h.astype(w1_ref.dtype), w1_ref[...],
                   preferred_element_type=jnp.float32)
           + b1_ref[...].astype(jnp.float32))
    o_ref[...] = out.astype(o_ref.dtype)


def pooler_end_logits(hidden_states, start_positions, params, *, tm=256):
    """hidden_states: [B,S,H1], start_positions: [B,S,H2] with H1+H2 == hidden_size."""
    w0, b0, gamma, beta, w1, b1 = params
    B, S, H1 = hidden_states.shape
    H2 = start_positions.shape[-1]
    H = H1 + H2
    assert w0.shape == (H, H)
    C = w1.shape[-1]

    M = B * S
    x1 = hidden_states.reshape(M, H1)
    x2 = start_positions.reshape(M, H2)

    # Row tiling: clamp tm to the (8-aligned) problem size, pad the row count so
    # pl.cdiv covers everything without dropping a tail.
    tm_eff = min(tm, _round_up(M, 8))
    M_pad = _round_up(M, tm_eff)
    if M_pad != M:
        x1 = jnp.pad(x1, ((0, M_pad - M), (0, 0)))
        x2 = jnp.pad(x2, ((0, M_pad - M), (0, 0)))

    # Split W0 into the rows that multiply hidden_states vs start_positions
    # (equivalent to dense_0 applied to the concatenation).
    w0a = w0[:H1, :]
    w0b = w0[H1:, :]

    # Lane-pad the classifier so stores are unmasked (multiple of 128 lanes).
    C_pad = _round_up(C, 128)
    w1p = jnp.pad(w1, ((0, 0), (0, C_pad - C))) if C_pad != C else w1
    b1p = jnp.pad(b1, ((0, C_pad - C),)) if C_pad != C else b1

    # Biases / LN params as (1, X) rows for in-kernel broadcast.
    b0r = b0.reshape(1, H)
    gr = gamma.reshape(1, H)
    br = beta.reshape(1, H)
    b1r = b1p.reshape(1, C_pad)

    grid = (pl.cdiv(M_pad, tm_eff),)
    out = pl.pallas_call(
        pooler_end_logits_kernel,
        out_shape=jax.ShapeDtypeStruct((M_pad, C_pad), jnp.float32),
        grid_spec=pltpu.PrefetchScalarGridSpec(
            num_scalar_prefetch=0,
            grid=grid,
            in_specs=[
                pl.BlockSpec((tm_eff, H1), lambda i: (i, 0)),   # hidden_states tile
                pl.BlockSpec((tm_eff, H2), lambda i: (i, 0)),   # start_positions tile
                pl.BlockSpec((H1, H), lambda i: (0, 0)),        # W0 top rows
                pl.BlockSpec((H2, H), lambda i: (0, 0)),        # W0 bottom rows
                pl.BlockSpec((1, H), lambda i: (0, 0)),         # b0
                pl.BlockSpec((1, H), lambda i: (0, 0)),         # gamma
                pl.BlockSpec((1, H), lambda i: (0, 0)),         # beta
                pl.BlockSpec((H, C_pad), lambda i: (0, 0)),     # W1 (lane padded)
                pl.BlockSpec((1, C_pad), lambda i: (0, 0)),     # b1 (lane padded)
            ],
            out_specs=pl.BlockSpec((tm_eff, C_pad), lambda i: (i, 0)),
        ),
        compiler_params=pltpu.CompilerParams(
            dimension_semantics=("parallel",)),
    )(x1, x2, w0a, w0b, b0r, gr, br, w1p, b1r)

    return out[:M, :C].reshape(B, S, C)


def reference(hidden_states, start_positions, params):
    w0, b0, gamma, beta, w1, b1 = params
    x = jnp.concatenate([hidden_states, start_positions], axis=-1).astype(jnp.float32)
    h = x @ w0 + b0
    h = jnp.tanh(h)
    mean = jnp.mean(h, axis=-1, keepdims=True)
    var = jnp.mean((h - mean) ** 2, axis=-1, keepdims=True)
    h = (h - mean) * jax.lax.rsqrt(var + 1e-5)
    h = h * gamma + beta
    return h @ w1 + b1


if __name__ == "__main__":
    B, S = 2, 8
    hidden_size = 32          # = dense_0 input = concat(last dims)
    num_classes = 4
    Hh = hidden_size // 2     # per-input feature width so concat -> hidden_size

    key = jax.random.PRNGKey(0)
    k = jax.random.split(key, 8)

    hidden_states = jax.random.normal(k[0], (B, S, Hh), dtype=jnp.float32)
    start_positions = jax.random.normal(k[1], (B, S, Hh), dtype=jnp.float32)

    # Deterministic parameter init (PyTorch Linear weight is (out,in); we store (in,out)).
    scale0 = 1.0 / jnp.sqrt(hidden_size)
    w0 = jax.random.uniform(k[2], (hidden_size, hidden_size), jnp.float32, -scale0, scale0)
    b0 = jax.random.uniform(k[3], (hidden_size,), jnp.float32, -scale0, scale0)
    gamma = jnp.ones((hidden_size,), jnp.float32)
    beta = jnp.zeros((hidden_size,), jnp.float32)
    w1 = jax.random.uniform(k[4], (hidden_size, num_classes), jnp.float32, -scale0, scale0)
    b1 = jax.random.uniform(k[5], (num_classes,), jnp.float32, -scale0, scale0)
    params = (w0, b0, gamma, beta, w1, b1)

    out = pooler_end_logits(hidden_states, start_positions, params)
    out = jax.block_until_ready(out)

    ref = reference(hidden_states, start_positions, params)
    assert out.shape == (B, S, num_classes)
    assert jnp.allclose(out, ref, atol=1e-5, rtol=1e-5)

    print("KERNEL_OK")
</pallas_src>

<mosaic_0001>
module attributes {stable_mosaic.version = 11 : i64} {
  func.func @pooler_end_logits_kernel(%arg0: i32, %arg1: memref<16x16xf32, #tpu.memory_space<vmem>>, %arg2: memref<16x16xf32, #tpu.memory_space<vmem>>, %arg3: memref<16x32xf32, #tpu.memory_space<vmem>>, %arg4: memref<16x32xf32, #tpu.memory_space<vmem>>, %arg5: memref<1x32xf32, #tpu.memory_space<vmem>>, %arg6: memref<1x32xf32, #tpu.memory_space<vmem>>, %arg7: memref<1x32xf32, #tpu.memory_space<vmem>>, %arg8: memref<32x128xf32, #tpu.memory_space<vmem>>, %arg9: memref<1x128xf32, #tpu.memory_space<vmem>>, %arg10: memref<16x128xf32, #tpu.memory_space<vmem>>) attributes {dimension_semantics = [#tpu.dimension_semantics<parallel>], iteration_bounds = array<i64: 1>, scalar_prefetch = 0 : i64, scratch_operands = 0 : i64, tpu.core_type = #tpu.core_type<tc>, window_params = [{transform_indices = @transform_0, window_bounds = array<i64: 16, 16>}, {transform_indices = @transform_1, window_bounds = array<i64: 16, 16>}, {pipeline_mode = #tpu.pipeline_mode<synchronous>, transform_indices = @transform_2, window_bounds = array<i64: 16, 32>}, {pipeline_mode = #tpu.pipeline_mode<synchronous>, transform_indices = @transform_3, window_bounds = array<i64: 16, 32>}, {pipeline_mode = #tpu.pipeline_mode<synchronous>, transform_indices = @transform_4, window_bounds = array<i64: 1, 32>}, {pipeline_mode = #tpu.pipeline_mode<synchronous>, transform_indices = @transform_5, window_bounds = array<i64: 1, 32>}, {pipeline_mode = #tpu.pipeline_mode<synchronous>, transform_indices = @transform_6, window_bounds = array<i64: 1, 32>}, {pipeline_mode = #tpu.pipeline_mode<synchronous>, transform_indices = @transform_7, window_bounds = array<i64: 32, 128>}, {pipeline_mode = #tpu.pipeline_mode<synchronous>, transform_indices = @transform_8, window_bounds = array<i64: 1, 128>}, {transform_indices = @transform_9, window_bounds = array<i64: 16, 128>}]} {
    %c0 = arith.constant 0 : index
    %c0_0 = arith.constant 0 : index
    %0 = vector.load %arg1[%c0, %c0_0] : memref<16x16xf32, #tpu.memory_space<vmem>>, vector<16x16xf32>
    %c0_1 = arith.constant 0 : index
    %c0_2 = arith.constant 0 : index
    %1 = vector.load %arg2[%c0_1, %c0_2] : memref<16x16xf32, #tpu.memory_space<vmem>>, vector<16x16xf32>
    %c0_3 = arith.constant 0 : index
    %c0_4 = arith.constant 0 : index
    %2 = vector.load %arg3[%c0_3, %c0_4] : memref<16x32xf32, #tpu.memory_space<vmem>>, vector<16x32xf32>
    %cst = arith.constant dense<0.000000e+00> : vector<16x32xf32>
    %3 = tpu.matmul %0, %2, %cst {dimension_numbers = #tpu.dot_dimension_numbers<[1], [0], [0], [1], [0, 0, 1, 1], [], []>} : vector<16x16xf32>, vector<16x32xf32>, vector<16x32xf32> -> vector<16x32xf32>
    %c0_5 = arith.constant 0 : index
    %c0_6 = arith.constant 0 : index
    %4 = vector.load %arg4[%c0_5, %c0_6] : memref<16x32xf32, #tpu.memory_space<vmem>>, vector<16x32xf32>
    %cst_7 = arith.constant dense<0.000000e+00> : vector<16x32xf32>
    %5 = tpu.matmul %1, %4, %cst_7 {dimension_numbers = #tpu.dot_dimension_numbers<[1], [0], [0], [1], [0, 0, 1, 1], [], []>} : vector<16x16xf32>, vector<16x32xf32>, vector<16x32xf32> -> vector<16x32xf32>
    %6 = arith.addf %3, %5 : vector<16x32xf32>
    %c0_8 = arith.constant 0 : index
    %c0_9 = arith.constant 0 : index
    %7 = vector.load %arg5[%c0_8, %c0_9] : memref<1x32xf32, #tpu.memory_space<vmem>>, vector<1x32xf32>
    %8 = vector.broadcast %7 : vector<1x32xf32> to vector<16x32xf32>
    %9 = arith.addf %6, %8 : vector<16x32xf32>
    %10 = math.tanh %9 : vector<16x32xf32>
    %cst_10 = arith.constant dense<0.000000e+00> : vector<16xf32>
    %11 = vector.multi_reduction <add>, %10, %cst_10 [1] : vector<16x32xf32> to vector<16xf32>
    %12 = vector.shape_cast %11 : vector<16xf32> to vector<16x1xf32>
    %cst_11 = arith.constant 3.200000e+01 : f32
    %13 = vector.broadcast %cst_11 : f32 to vector<16x1xf32>
    %14 = arith.divf %12, %13 : vector<16x1xf32>
    %15 = vector.broadcast %14 : vector<16x1xf32> to vector<16x32xf32>
    %16 = arith.subf %10, %15 : vector<16x32xf32>
    %17 = arith.mulf %16, %16 : vector<16x32xf32>
    %cst_12 = arith.constant dense<0.000000e+00> : vector<16xf32>
    %18 = vector.multi_reduction <add>, %17, %cst_12 [1] : vector<16x32xf32> to vector<16xf32>
    %19 = vector.shape_cast %18 : vector<16xf32> to vector<16x1xf32>
    %cst_13 = arith.constant 3.200000e+01 : f32
    %20 = vector.broadcast %cst_13 : f32 to vector<16x1xf32>
    %21 = arith.divf %19, %20 : vector<16x1xf32>
    %22 = vector.broadcast %14 : vector<16x1xf32> to vector<16x32xf32>
    %23 = arith.subf %10, %22 : vector<16x32xf32>
    %cst_14 = arith.constant 9.99999974E-6 : f32
    %24 = vector.broadcast %cst_14 : f32 to vector<16x1xf32>
    %25 = arith.addf %21, %24 : vector<16x1xf32>
    %26 = math.rsqrt %25 : vector<16x1xf32>
    %27 = vector.broadcast %26 : vector<16x1xf32> to vector<16x32xf32>
    %28 = arith.mulf %23, %27 : vector<16x32xf32>
    %c0_15 = arith.constant 0 : index
    %c0_16 = arith.constant 0 : index
    %29 = vector.load %arg6[%c0_15, %c0_16] : memref<1x32xf32, #tpu.memory_space<vmem>>, vector<1x32xf32>
    %30 = vector.broadcast %29 : vector<1x32xf32> to vector<16x32xf32>
    %31 = arith.mulf %28, %30 : vector<16x32xf32>
    %c0_17 = arith.constant 0 : index
    %c0_18 = arith.constant 0 : index
    %32 = vector.load %arg7[%c0_17, %c0_18] : memref<1x32xf32, #tpu.memory_space<vmem>>, vector<1x32xf32>
    %33 = vector.broadcast %32 : vector<1x32xf32> to vector<16x32xf32>
    %34 = arith.addf %31, %33 : vector<16x32xf32>
    %c0_19 = arith.constant 0 : index
    %c0_20 = arith.constant 0 : index
    %35 = vector.load %arg8[%c0_19, %c0_20] : memref<32x128xf32, #tpu.memory_space<vmem>>, vector<32x128xf32>
    %cst_21 = arith.constant dense<0.000000e+00> : vector<16x128xf32>
    %36 = tpu.matmul %34, %35, %cst_21 {dimension_numbers = #tpu.dot_dimension_numbers<[1], [0], [0], [1], [0, 0, 1, 1], [], []>} : vector<16x32xf32>, vector<32x128xf32>, vector<16x128xf32> -> vector<16x128xf32>
    %c0_22 = arith.constant 0 : index
    %c0_23 = arith.constant 0 : index
    %37 = vector.load %arg9[%c0_22, %c0_23] : memref<1x128xf32, #tpu.memory_space<vmem>>, vector<1x128xf32>
    %38 = vector.broadcast %37 : vector<1x128xf32> to vector<16x128xf32>
    %39 = arith.addf %36, %38 : vector<16x128xf32>
    %c0_24 = arith.constant 0 : index
    %c0_25 = arith.constant 0 : index
    %40 = vector.load %arg10[%c0_24, %c0_25] : memref<16x128xf32, #tpu.memory_space<vmem>>, vector<16x128xf32>
    tpu.vector_store %arg10[%c0_24, %c0_25], %39 {strides = array<i32>} : memref<16x128xf32, #tpu.memory_space<vmem>>, vector<16x128xf32>,
    return
  }
  func.func @transform_0(%arg0: i32) -> (i32, i32) {
    %c0_i32 = arith.constant 0 : i32
    %c0_i32_0 = arith.constant 0 : i32
    return %arg0, %c0_i32 : i32, i32
  }
  func.func @transform_1(%arg0: i32) -> (i32, i32) {
    %c0_i32 = arith.constant 0 : i32
    %c0_i32_0 = arith.constant 0 : i32
    return %arg0, %c0_i32 : i32, i32
  }
  func.func @transform_2(%arg0: i32) -> (i32, i32) {
    %c0_i32 = arith.constant 0 : i32
    %c0_i32_0 = arith.constant 0 : i32
    %c0_i32_1 = arith.constant 0 : i32
    return %c0_i32, %c0_i32_0 : i32, i32
  }
  func.func @transform_3(%arg0: i32) -> (i32, i32) {
    %c0_i32 = arith.constant 0 : i32
    %c0_i32_0 = arith.constant 0 : i32
    %c0_i32_1 = arith.constant 0 : i32
    return %c0_i32, %c0_i32_0 : i32, i32
  }
  func.func @transform_4(%arg0: i32) -> (i32, i32) {
    %c0_i32 = arith.constant 0 : i32
    %c0_i32_0 = arith.constant 0 : i32
    %c0_i32_1 = arith.constant 0 : i32
    return %c0_i32, %c0_i32_0 : i32, i32
  }
  func.func @transform_5(%arg0: i32) -> (i32, i32) {
    %c0_i32 = arith.constant 0 : i32
    %c0_i32_0 = arith.constant 0 : i32
    %c0_i32_1 = arith.constant 0 : i32
    return %c0_i32, %c0_i32_0 : i32, i32
  }
  func.func @transform_6(%arg0: i32) -> (i32, i32) {
    %c0_i32 = arith.constant 0 : i32
    %c0_i32_0 = arith.constant 0 : i32
    %c0_i32_1 = arith.constant 0 : i32
    return %c0_i32, %c0_i32_0 : i32, i32
  }
  func.func @transform_7(%arg0: i32) -> (i32, i32) {
    %c0_i32 = arith.constant 0 : i32
    %c0_i32_0 = arith.constant 0 : i32
    %c0_i32_1 = arith.constant 0 : i32
    return %c0_i32, %c0_i32_0 : i32, i32
  }
  func.func @transform_8(%arg0: i32) -> (i32, i32) {
    %c0_i32 = arith.constant 0 : i32
    %c0_i32_0 = arith.constant 0 : i32
    %c0_i32_1 = arith.constant 0 : i32
    return %c0_i32, %c0_i32_0 : i32, i32
  }
  func.func @transform_9(%arg0: i32) -> (i32, i32) {
    %c0_i32 = arith.constant 0 : i32
    %c0_i32_0 = arith.constant 0 : i32
    return %arg0, %c0_i32 : i32, i32
  }
}

</mosaic_0001>

<llo_original>
// kernel: tpu_custom_call.1
$region0: #{tpu_custom_call.1}
  #allocation0 [shape = 'u32[]', space=smem, size = 0x4, offset = 0x4, fixed_abs, tag = 'smem constant byte address 0x4 - core index']
  #allocation1 [shape = 'u32[144,128]{1,0:T(1,128)}', space=vmem, size = 0x12000, scoped, tag = 'internal scratch']
  %s0 = inlined_call_operand.hbm [shape: f32[16,16], index: 0, kind: input, shape index: {}]
  %s1 = inlined_call_operand.hbm [shape: f32[16,16], index: 1, kind: input, shape index: {}]
  %s2 = inlined_call_operand.hbm [shape: f32[16,32], index: 2, kind: input, shape index: {}]
  %s3 = inlined_call_operand.hbm [shape: f32[16,32], index: 3, kind: input, shape index: {}]
  %s4 = inlined_call_operand.vmem [shape: f32[1,32], index: 4, kind: input, shape index: {}]
  %s5 = inlined_call_operand.vmem [shape: f32[1,32], index: 5, kind: input, shape index: {}]
  %s6 = inlined_call_operand.vmem [shape: f32[1,32], index: 6, kind: input, shape index: {}]
  %s7 = inlined_call_operand.hbm [shape: f32[32,128], index: 7, kind: input, shape index: {}]
  %s8 = inlined_call_operand.vmem [shape: f32[1,128], index: 8, kind: input, shape index: {}]
  %s9 = inlined_call_operand.hbm [shape: f32[16,128], index: 9, kind: output, shape index: {}]
  %s10 = sld [smem:[#allocation0]]
  $region66: #{tpu_custom_call.1} parent=0
    _
  %s12 = ssub.s32 1, %s10
  %s13 = scalar_select 0, %s12, %s10
  $region1: #{tpu_custom_call.1} parent=0
    #allocation2 [shape = 'u8[8192]{0}', space=vmem, size = 0x2000, scoped, tag = 'input window, operand 0, single buffered']
    #allocation3 [shape = 's32[1]{0}', space=sflag, size = 0x4, scoped, tag = 'scoped memory for tpu_custom_call.1']
    #allocation4 [shape = 's32[1]{0}', space=sflag, size = 0x4, scoped, tag = 'scoped memory for tpu_custom_call.1']
    #allocation5 [shape = 'u8[8192]{0}', space=vmem, size = 0x2000, scoped, tag = 'input window, operand 1, single buffered']
    #allocation6 [shape = 's32[1]{0}', space=sflag, size = 0x4, scoped, tag = 'scoped memory for tpu_custom_call.1']
    #allocation7 [shape = 'u8[8192]{0}', space=vmem, size = 0x2000, scoped, tag = 'input window, operand 2, single buffered']
    #allocation8 [shape = 'u8[8192]{0}', space=vmem, size = 0x2000, scoped, tag = 'input window, operand 3, single buffered']
    #allocation9 [shape = 's32[1]{0}', space=sflag, size = 0x4, scoped, tag = 'scoped memory for tpu_custom_call.1']
    #allocation10 [shape = 'u8[16384]{0}', space=vmem, size = 0x4000, scoped, tag = 'input window, operand 7, single buffered']
    #allocation11 [shape = 'u8[8192]{0}', space=vmem, size = 0x2000, scoped, tag = 'output window, operand 0, single buffered']
    %14 = vsyncpa [#allocation3], 0
    %15 = vsyncpa [#allocation6], 0
    %16 = vsyncpa [#allocation9], 0
    %17 = vsyncpa [#allocation4], 0
    // Predicated region
    $region2: #{tpu_custom_call.1} parent=1 // pred_check
      _
    $region3: #{tpu_custom_call.1} parent=1 // pred_check_branch
      %19 = sbr.rel (0) target = $region5
    $region4: #{tpu_custom_call.1} parent=1 // pred_region
      %s21 = ssub.s32 256, 256
      %22 = vsyncadd [#allocation3], %s21
      %s23 = sshll.u32 [#allocation2], 4
      %s24 = int_to_ptr.vmem [resolvable:$true] %s23
      %29 = dma.hbm_to_vmem [thread:$0]  %s0, 256, %s24, [#allocation3], 128, 128, 8
    $region5: #{tpu_custom_call.1} parent=1 // pred_fallthru
      _
    // Predicated region
    $region6: #{tpu_custom_call.1} parent=1 // pred_check
      _
    $region7: #{tpu_custom_call.1} parent=1 // pred_check_branch
      %31 = sbr.rel (0) target = $region9
    $region8: #{tpu_custom_call.1} parent=1 // pred_region
      %s33 = ssub.s32 256, 256
      %34 = vsyncadd [#allocation6], %s33
      %s35 = sshll.u32 [#allocation5], 4
      %s36 = int_to_ptr.vmem [resolvable:$true] %s35
      %41 = dma.hbm_to_vmem [thread:$0]  %s1, 256, %s36, [#allocation6], 128, 128, 8
    $region9: #{tpu_custom_call.1} parent=1 // pred_fallthru
      _
    // Predicated region
    $region10: #{tpu_custom_call.1} parent=1 // pred_check
      _
    $region11: #{tpu_custom_call.1} parent=1 // pred_check_branch
      %43 = sbr.rel (0) target = $region13
    $region12: #{tpu_custom_call.1} parent=1 // pred_region
      %s45 = ssub.s32 256, 256
      %46 = vsyncadd [#allocation6], %s45
      %s47 = sshll.u32 [#allocation7], 4
      %s48 = int_to_ptr.vmem [resolvable:$true] %s47
      %53 = dma.hbm_to_vmem [thread:$0]  %s2, 256, %s48, [#allocation6], 128, 128, 8
    $region13: #{tpu_custom_call.1} parent=1 // pred_fallthru
      _
    // Predicated region
    $region14: #{tpu_custom_call.1} parent=1 // pred_check
      _
    $region15: #{tpu_custom_call.1} parent=1 // pred_check_branch
      %55 = sbr.rel (0) target = $region17
    $region16: #{tpu_custom_call.1} parent=1 // pred_region
      %s57 = ssub.s32 256, 256
      %58 = vsyncadd [#allocation9], %s57
      %s59 = sshll.u32 [#allocation8], 4
      %s60 = int_to_ptr.vmem [resolvable:$true] %s59
      %65 = dma.hbm_to_vmem [thread:$0]  %s3, 256, %s60, [#allocation9], 128, 128, 8
    $region17: #{tpu_custom_call.1} parent=1 // pred_fallthru
      _
    // Predicated region
    $region18: #{tpu_custom_call.1} parent=1 // pred_check
      _
    $region19: #{tpu_custom_call.1} parent=1 // pred_check_branch
      %67 = sbr.rel (0) target = $region21
    $region20: #{tpu_custom_call.1} parent=1 // pred_region
      _
    $region21: #{tpu_custom_call.1} parent=1 // pred_fallthru
      _
    // Predicated region
    $region22: #{tpu_custom_call.1} parent=1 // pred_check
      _
    $region23: #{tpu_custom_call.1} parent=1 // pred_check_branch
      %69 = sbr.rel (0) target = $region25
    $region24: #{tpu_custom_call.1} parent=1 // pred_region
      _
    $region25: #{tpu_custom_call.1} parent=1 // pred_fallthru
      _
    // Predicated region
    $region26: #{tpu_custom_call.1} parent=1 // pred_check
      _
    $region27: #{tpu_custom_call.1} parent=1 // pred_check_branch
      %71 = sbr.rel (0) target = $region29
    $region28: #{tpu_custom_call.1} parent=1 // pred_region
      _
    $region29: #{tpu_custom_call.1} parent=1 // pred_fallthru
      _
    // Predicated region
    $region30: #{tpu_custom_call.1} parent=1 // pred_check
      _
    $region31: #{tpu_custom_call.1} parent=1 // pred_check_branch
      %73 = sbr.rel (0) target = $region33
    $region32: #{tpu_custom_call.1} parent=1 // pred_region
      %s75 = ssub.s32 512, 512
      %76 = vsyncadd [#allocation9], %s75
      %s77 = sshll.u32 [#allocation10], 4
      %s78 = int_to_ptr.vmem [resolvable:$true] %s77
      %83 = dma.hbm_to_vmem [thread:$0]  %s7, 512, %s78, [#allocation9], 128, 128, 8
    $region33: #{tpu_custom_call.1} parent=1 // pred_fallthru
      _
    // Predicated region
    $region34: #{tpu_custom_call.1} parent=1 // pred_check
      _
    $region35: #{tpu_custom_call.1} parent=1 // pred_check_branch
      %85 = sbr.rel (0) target = $region37
    $region36: #{tpu_custom_call.1} parent=1 // pred_region
      _
    $region37: #{tpu_custom_call.1} parent=1 // pred_fallthru
      _
    // Predicated region
    $region38: #{tpu_custom_call.1} parent=1 // pred_check
      _
    $region39: #{tpu_custom_call.1} parent=1 // pred_check_branch
      %87 = sbr.rel (0) target = $region41
    $region40: #{tpu_custom_call.1} parent=1 // pred_region
      %88 = dma.done [#allocation3], 256
    $region41: #{tpu_custom_call.1} parent=1 // pred_fallthru
      _
    // Predicated region
    $region42: #{tpu_custom_call.1} parent=1 // pred_check
      _
    $region43: #{tpu_custom_call.1} parent=1 // pred_check_branch
      %90 = sbr.rel (0) target = $region45
    $region44: #{tpu_custom_call.1} parent=1 // pred_region
      %91 = dma.done [#allocation6], 256
    $region45: #{tpu_custom_call.1} parent=1 // pred_fallthru
      _
    // Predicated region
    $region46: #{tpu_custom_call.1} parent=1 // pred_check
      _
    $region47: #{tpu_custom_call.1} parent=1 // pred_check_branch
      %93 = sbr.rel (0) target = $region49
    $region48: #{tpu_custom_call.1} parent=1 // pred_region
      %94 = dma.done [#allocation6], 256
    $region49: #{tpu_custom_call.1} parent=1 // pred_fallthru
      _
    // Predicated region
    $region50: #{tpu_custom_call.1} parent=1 // pred_check
      _
    $region51: #{tpu_custom_call.1} parent=1 // pred_check_branch
      %96 = sbr.rel (0) target = $region53
    $region52: #{tpu_custom_call.1} parent=1 // pred_region
      %97 = dma.done [#allocation9], 256
    $region53: #{tpu_custom_call.1} parent=1 // pred_fallthru
      _
    // Predicated region
    $region54: #{tpu_custom_call.1} parent=1 // pred_check
      _
    $region55: #{tpu_custom_call.1} parent=1 // pred_check_branch
      %99 = sbr.rel (0) target = $region57
    $region56: #{tpu_custom_call.1} parent=1 // pred_region
      %100 = dma.done [#allocation9], 512
    $region57: #{tpu_custom_call.1} parent=1 // pred_fallthru
      _
    %v101 = vld [vmem:[#allocation2] sm:$0xff]
    %v102 = vld [vmem:[#allocation2 + $0x8] sm:$0xff]
    %v103 = vld [vmem:[#allocation5] sm:$0xff]
    %v104 = vld [vmem:[#allocation5 + $0x8] sm:$0xff]
    %v105 = vld [vmem:[#allocation7] sm:$0xff]
    %v106 = vld [vmem:[#allocation7 + $0x8] sm:$0xff]
    %v107 = vld [vmem:[#allocation8] sm:$0xff]
    %v108 = vld [vmem:[#allocation8 + $0x8] sm:$0xff]
    %vm109 = vcmask 130048
    %v111 = vsel %vm109, %v103, 0
    %v114 = vsel %vm109, %v104, 0
    %116 = vmatprep.subr.mxu0 0.0
    %117 = vmatpush1.msra.mxu0 0.0
    %118 = vmatprep.subr.mxu0 0.0
    %119 = vmatpush1.msra.mxu0 0.0
    %120 = vmatprep.subr.mxu0 0.0
    %121 = vmatpush1.msra.mxu0 0.0
    %122 = vmatprep.subr.mxu0 0.0
    %123 = vmatpush1.msra.mxu0 0.0
    %124 = vmatprep.subr.mxu0 0.0
    %125 = vmatpush1.msra.mxu0 0.0
    %126 = vmatprep.subr.mxu0 0.0
    %127 = vmatpush1.msra.mxu0 0.0
    %128 = vmatprep.subr.mxu0 0.0
    %129 = vmatpush1.msra.mxu0 0.0
    %130 = vmatprep.subr.mxu0 0.0
    %131 = vmatpush1.msra.mxu0 0.0
    %132 = vmatprep.subr.mxu0 0.0
    %133 = vmatpush1.msra.mxu0 0.0
    %134 = vmatprep.subr.mxu0 0.0
    %135 = vmatpush1.msra.mxu0 0.0
    %136 = vmatprep.subr.mxu0 0.0
    %137 = vmatpush1.msra.mxu0 0.0
    %138 = vmatprep.subr.mxu0 0.0
    %139 = vmatpush1.msra.mxu0 0.0
    %140 = vmatprep.subr.mxu0 0.0
    %141 = vmatpush1.msra.mxu0 0.0
    %142 = vmatprep.subr.mxu0 0.0
    %143 = vmatpush1.msra.mxu0 0.0
    %144 = vmatprep.subr.mxu0 0.0
    %145 = vmatpush1.msra.mxu0 %v108
    %146 = vmatprep.subr.mxu0 0.0
    %147 = vmatpush1.msra.mxu0 %v107
    %148 = vmatprep.subr.mxu0 0.0
    %149 = vmatpush2.msra.mxu0 0.0
    %150 = vmatprep.subr.mxu0 0.0
    %151 = vmatpush2.msra.mxu0 0.0
    %152 = vmatprep.subr.mxu0 0.0
    %153 = vmatpush2.msra.mxu0 0.0
    %154 = vmatprep.subr.mxu0 0.0
    %155 = vmatpush2.msra.mxu0 0.0
    %156 = vmatprep.subr.mxu0 0.0
    %157 = vmatpush2.msra.mxu0 0.0
    %158 = vmatprep.subr.mxu0 0.0
    %159 = vmatpush2.msra.mxu0 0.0
    %160 = vmatprep.subr.mxu0 0.0
    %161 = vmatpush2.msra.mxu0 0.0
    %162 = vmatprep.subr.mxu0 0.0
    %163 = vmatpush2.msra.mxu0 0.0
    %164 = vmatprep.subr.mxu0 0.0
    %165 = vmatpush2.msra.mxu0 0.0
    %166 = vmatprep.subr.mxu0 0.0
    %167 = vmatpush2.msra.mxu0 0.0
    %168 = vmatprep.subr.mxu0 0.0
    %169 = vmatpush2.msra.mxu0 0.0
    %170 = vmatprep.subr.mxu0 0.0
    %171 = vmatpush2.msra.mxu0 0.0
    %172 = vmatprep.subr.mxu0 0.0
    %173 = vmatpush2.msra.mxu0 0.0
    %174 = vmatprep.subr.mxu0 0.0
    %175 = vmatpush2.msra.mxu0 0.0
    %176 = vmatprep.subr.mxu0 0.0
    %177 = vmatpush2.msra.mxu0 0.0
    %178 = vmatprep.subr.mxu0 0.0
    %179 = vmatpush2.msra.mxu0 0.0
    %180 = vmatprep.mubr.f32.mxu0 0.0
    %181 = vmatmul.mubr.f32.gmra.mxu0 %v111
    %v182 = vpop.f32.mrf.mxu0
    %v183 = vadd.f32 0.0, %v182
    %v184 = vpop.f32.mrf.mxu0
    %185 = vmatprep.mubr.f32.mxu0 0.0
    %186 = vmatmul.mubr.f32.gmra.mxu0 %v114
    %v187 = vpop.f32.mrf.mxu0
    %v188 = vadd.f32 0.0, %v187
    %v189 = vpop.f32.mrf.mxu0
    %190 = vdwg.mxu0
    %v192 = vsel %vm109, %v101, 0
    %v195 = vsel %vm109, %v102, 0
    %197 = vmatprep.subr.mxu0 0.0
    %198 = vmatpush1.msra.mxu0 0.0
    %199 = vmatprep.subr.mxu0 0.0
    %200 = vmatpush1.msra.mxu0 0.0
    %201 = vmatprep.subr.mxu0 0.0
    %202 = vmatpush1.msra.mxu0 0.0
    %203 = vmatprep.subr.mxu0 0.0
    %204 = vmatpush1.msra.mxu0 0.0
    %205 = vmatprep.subr.mxu0 0.0
    %206 = vmatpush1.msra.mxu0 0.0
    %207 = vmatprep.subr.mxu0 0.0
    %208 = vmatpush1.msra.mxu0 0.0
    %209 = vmatprep.subr.mxu0 0.0
    %210 = vmatpush1.msra.mxu0 0.0
    %211 = vmatprep.subr.mxu0 0.0
    %212 = vmatpush1.msra.mxu0 0.0
    %213 = vmatprep.subr.mxu0 0.0
    %214 = vmatpush1.msra.mxu0 0.0
    %215 = vmatprep.subr.mxu0 0.0
    %216 = vmatpush1.msra.mxu0 0.0
    %217 = vmatprep.subr.mxu0 0.0
    %218 = vmatpush1.msra.mxu0 0.0
    %219 = vmatprep.subr.mxu0 0.0
    %220 = vmatpush1.msra.mxu0 0.0
    %221 = vmatprep.subr.mxu0 0.0
    %222 = vmatpush1.msra.mxu0 0.0
    %223 = vmatprep.subr.mxu0 0.0
    %224 = vmatpush1.msra.mxu0 0.0
    %225 = vmatprep.subr.mxu0 0.0
    %226 = vmatpush1.msra.mxu0 %v106
    %227 = vmatprep.subr.mxu0 0.0
    %228 = vmatpush1.msra.mxu0 %v105
    %229 = vmatprep.subr.mxu0 0.0
    %230 = vmatpush2.msra.mxu0 0.0
    %231 = vmatprep.subr.mxu0 0.0
    %232 = vmatpush2.msra.mxu0 0.0
    %233 = vmatprep.subr.mxu0 0.0
    %234 = vmatpush2.msra.mxu0 0.0
    %235 = vmatprep.subr.mxu0 0.0
    %236 = vmatpush2.msra.mxu0 0.0
    %237 = vmatprep.subr.mxu0 0.0
    %238 = vmatpush2.msra.mxu0 0.0
    %239 = vmatprep.subr.mxu0 0.0
    %240 = vmatpush2.msra.mxu0 0.0
    %241 = vmatprep.subr.mxu0 0.0
    %242 = vmatpush2.msra.mxu0 0.0
    %243 = vmatprep.subr.mxu0 0.0
    %244 = vmatpush2.msra.mxu0 0.0
    %245 = vmatprep.subr.mxu0 0.0
    %246 = vmatpush2.msra.mxu0 0.0
    %247 = vmatprep.subr.mxu0 0.0
    %248 = vmatpush2.msra.mxu0 0.0
    %249 = vmatprep.subr.mxu0 0.0
    %250 = vmatpush2.msra.mxu0 0.0
    %251 = vmatprep.subr.mxu0 0.0
    %252 = vmatpush2.msra.mxu0 0.0
    %253 = vmatprep.subr.mxu0 0.0
    %254 = vmatpush2.msra.mxu0 0.0
    %255 = vmatprep.subr.mxu0 0.0
    %256 = vmatpush2.msra.mxu0 0.0
    %257 = vmatprep.subr.mxu0 0.0
    %258 = vmatpush2.msra.mxu0 0.0
    %259 = vmatprep.subr.mxu0 0.0
    %260 = vmatpush2.msra.mxu0 0.0
    %261 = vmatprep.mubr.f32.mxu0 0.0
    %262 = vmatmul.mubr.f32.gmra.mxu0 %v192
    %v263 = vpop.f32.mrf.mxu0
    %v264 = vadd.f32 %v183, %v263
    %v265 = vpop.f32.mrf.mxu0
    %266 = vmatprep.mubr.f32.mxu0 0.0
    %267 = vmatmul.mubr.f32.gmra.mxu0 %v195
    %v268 = vpop.f32.mrf.mxu0
    %v269 = vadd.f32 %v188, %v268
    %v270 = vpop.f32.mrf.mxu0
    %271 = vdwg.mxu0
    %v272 = vld [vmem:[%s4] sm:$0x1]
    %v274 = vlaneseq
    %v275 = vshrl.u32 %v274, 7
    %v276 = vsub.s32 0, %v275
    %v277 = vrot.slane %v272, %v276
    %v279 = vadd.f32 %v264, %v277
    %v280 = vadd.f32 %v269, %v277
    %v281 = vtanh.pop %v279
    %v282 = vtanh.pop %v280
    %vm283 = vcmask 261120
    %v284 = vsel %vm283, %v281, 0.0
    %285 = vadd.xlane.f32.xlu0 %v284
    %v286 = vpop.xlane.xlu0 %285
    %v287 = vsel %vm283, %v282, 0.0
    %288 = vadd.xlane.f32.xlu0 %v287
    %v289 = vpop.xlane.xlu0 %288
    %v290 = vrcp.pop 32.0
    %v291 = vmul.f32 %v286, %v290
    %v292 = vmul.f32 %v289, %v290
    %v293 = vsub.f32 %v281, %v291
    %v294 = vsub.f32 %v282, %v292
    %v295 = vmul.f32 %v293, %v293
    %v296 = vmul.f32 %v294, %v294
    %v297 = vsel %vm283, %v295, 0.0
    %298 = vadd.xlane.f32.xlu0 %v297
    %v299 = vpop.xlane.xlu0 %298
    %v300 = vsel %vm283, %v296, 0.0
    %301 = vadd.xlane.f32.xlu0 %v300
    %v302 = vpop.xlane.xlu0 %301
    %v303 = vmul.f32 %v299, %v290
    %v304 = vmul.f32 %v302, %v290
    %v305 = vadd.f32 %v303, 1e-05
    %v306 = vadd.f32 %v304, 1e-05
    %v307 = vrsqrt.pop %v305
    %v308 = vrsqrt.pop %v306
    %v309 = vmul.f32 %v293, %v307
    %v310 = vmul.f32 %v294, %v308
    %v311 = vld [vmem:[%s5] sm:$0x1]
    %v313 = vlaneseq
    %v314 = vshrl.u32 %v313, 7
    %v315 = vsub.s32 0, %v314
    %v316 = vrot.slane %v311, %v315
    %v318 = vmul.f32 %v309, %v316
    %v319 = vmul.f32 %v310, %v316
    %v320 = vld [vmem:[%s6] sm:$0x1]
    %v322 = vlaneseq
    %v323 = vshrl.u32 %v322, 7
    %v324 = vsub.s32 0, %v323
    %v325 = vrot.slane %v320, %v324
    %v327 = vadd.f32 %v318, %v325
    %v328 = vadd.f32 %v319, %v325
    %v329 = vld [vmem:[#allocation10] sm:$0xff]
    %v330 = vld [vmem:[#allocation10 + $0x8] sm:$0xff]
    %v331 = vld [vmem:[#allocation10 + $0x10] sm:$0xff]
    %v332 = vld [vmem:[#allocation10 + $0x18] sm:$0xff]
    %v333 = vld [vmem:[%s8] sm:$0x1]
    %v335 = vlaneseq
    %v336 = vshrl.u32 %v335, 7
    %v337 = vsub.s32 0, %v336
    %v338 = vrot.slane %v333, %v337
    %v341 = vsel %vm283, %v327, 0
    %v344 = vsel %vm283, %v328, 0
    %346 = vmatprep.subr.mxu0 0.0
    %347 = vmatpush1.msra.mxu0 0.0
    %348 = vmatprep.subr.mxu0 0.0
    %349 = vmatpush1.msra.mxu0 0.0
    %350 = vmatprep.subr.mxu0 0.0
    %351 = vmatpush1.msra.mxu0 0.0
    %352 = vmatprep.subr.mxu0 0.0
    %353 = vmatpush1.msra.mxu0 0.0
    %354 = vmatprep.subr.mxu0 0.0
    %355 = vmatpush1.msra.mxu0 0.0
    %356 = vmatprep.subr.mxu0 0.0
    %357 = vmatpush1.msra.mxu0 0.0
    %358 = vmatprep.subr.mxu0 0.0
    %359 = vmatpush1.msra.mxu0 0.0
    %360 = vmatprep.subr.mxu0 0.0
    %361 = vmatpush1.msra.mxu0 0.0
    %362 = vmatprep.subr.mxu0 0.0
    %363 = vmatpush1.msra.mxu0 0.0
    %364 = vmatprep.subr.mxu0 0.0
    %365 = vmatpush1.msra.mxu0 0.0
    %366 = vmatprep.subr.mxu0 0.0
    %367 = vmatpush1.msra.mxu0 0.0
    %368 = vmatprep.subr.mxu0 0.0
    %369 = vmatpush1.msra.mxu0 0.0
    %370 = vmatprep.subr.mxu0 0.0
    %371 = vmatpush1.msra.mxu0 %v332
    %372 = vmatprep.subr.mxu0 0.0
    %373 = vmatpush1.msra.mxu0 %v331
    %374 = vmatprep.subr.mxu0 0.0
    %375 = vmatpush1.msra.mxu0 %v330
    %376 = vmatprep.subr.mxu0 0.0
    %377 = vmatpush1.msra.mxu0 %v329
    %378 = vmatprep.subr.mxu0 0.0
    %379 = vmatpush2.msra.mxu0 0.0
    %380 = vmatprep.subr.mxu0 0.0
    %381 = vmatpush2.msra.mxu0 0.0
    %382 = vmatprep.subr.mxu0 0.0
    %383 = vmatpush2.msra.mxu0 0.0
    %384 = vmatprep.subr.mxu0 0.0
    %385 = vmatpush2.msra.mxu0 0.0
    %386 = vmatprep.subr.mxu0 0.0
    %387 = vmatpush2.msra.mxu0 0.0
    %388 = vmatprep.subr.mxu0 0.0
    %389 = vmatpush2.msra.mxu0 0.0
    %390 = vmatprep.subr.mxu0 0.0
    %391 = vmatpush2.msra.mxu0 0.0
    %392 = vmatprep.subr.mxu0 0.0
    %393 = vmatpush2.msra.mxu0 0.0
    %394 = vmatprep.subr.mxu0 0.0
    %395 = vmatpush2.msra.mxu0 0.0
    %396 = vmatprep.subr.mxu0 0.0
    %397 = vmatpush2.msra.mxu0 0.0
    %398 = vmatprep.subr.mxu0 0.0
    %399 = vmatpush2.msra.mxu0 0.0
    %400 = vmatprep.subr.mxu0 0.0
    %401 = vmatpush2.msra.mxu0 0.0
    %402 = vmatprep.subr.mxu0 0.0
    %403 = vmatpush2.msra.mxu0 0.0
    %404 = vmatprep.subr.mxu0 0.0
    %405 = vmatpush2.msra.mxu0 0.0
    %406 = vmatprep.subr.mxu0 0.0
    %407 = vmatpush2.msra.mxu0 0.0
    %408 = vmatprep.subr.mxu0 0.0
    %409 = vmatpush2.msra.mxu0 0.0
    %410 = vmatprep.mubr.f32.mxu0 0.0
    %411 = vmatmul.mubr.f32.gmra.mxu0 %v341
    %v412 = vpop.f32.mrf.mxu0
    %v413 = vadd.f32 %v338, %v412
    %v414 = vpop.f32.mrf.mxu0
    %415 = vmatprep.mubr.f32.mxu0 0.0
    %416 = vmatmul.mubr.f32.gmra.mxu0 %v344
    %v417 = vpop.f32.mrf.mxu0
    %v418 = vadd.f32 %v338, %v417
    %v419 = vpop.f32.mrf.mxu0
    %420 = vdwg.mxu0
    %421 = vst [vmem:[#allocation11] sm:$0xff] %v413
    %422 = vst [vmem:[#allocation11 + $0x8] sm:$0xff] %v418
    // Predicated region
    $region58: #{tpu_custom_call.1} parent=1 // pred_check
      _
    $region59: #{tpu_custom_call.1} parent=1 // pred_check_branch
      %424 = sbr.rel (0) target = $region61
    $region60: #{tpu_custom_call.1} parent=1 // pred_region
      %s426 = ssub.s32 256, 256
      %427 = vsyncadd [#allocation4], %s426
      %s428 = sshll.u32 [#allocation11], 4
      %s429 = int_to_ptr.vmem [resolvable:$true] %s428
      %434 = dma.vmem_to_hbm [thread:$0]  %s429, 256, %s9, [#allocation4], 128, 128, 8
    $region61: #{tpu_custom_call.1} parent=1 // pred_fallthru
      _
    // Predicated region
    $region62: #{tpu_custom_call.1} parent=1 // pred_check
      _
    $region63: #{tpu_custom_call.1} parent=1 // pred_check_branch
      %436 = sbr.rel (0) target = $region65
    $region64: #{tpu_custom_call.1} parent=1 // pred_region
      %437 = dma.done [#allocation4], 256
    $region65: #{tpu_custom_call.1} parent=1 // pred_fallthru
      _
    %438 = vsyncpa [#allocation3], 1
    %439 = vsyncpa [#allocation6], 1
    %440 = vsyncpa [#allocation9], 1
    %441 = vsyncpa [#allocation4], 1

</llo_original>
